<compile_context>
chip_gen: v6e
topology: v6e:2x2x1
jax: 0.10.0
libtpu: 0.0.40
codegen_flags: <defaults>
</compile_context>

<pallas_src>
import jax
import jax.numpy as jnp
from jax import lax
from jax.experimental import pallas as pl
from jax.experimental.pallas import tpu as pltpu


def _round_up(n, m):
    return (n + m - 1) // m * m


def _pick_time_tile(C, T, target_block_bytes=2 << 20, max_tile=2048):
    """Lane-dense time tile sized by bytes: big enough to amortize the ~0.35us per-step
    overhead, small enough that double-buffered in+out blocks fit every chip's VMEM."""
    tT = max(target_block_bytes // (max(C, 1) * 4), 128)
    tT = (tT // 128) * 128                 # lane-dense: multiple of 128
    tT = min(tT, max_tile, _round_up(T, 128))
    return tT


def _lane_prefix_sum(v, lane, tT):
    """Hillis–Steele inclusive prefix sum of a (1, tT) f32 row along the lane axis.

    log2(tT) steps of XLU lane rotate (pltpu.roll) + masked VPU add: exact f32,
    no MXU involvement, no O(tT^2) scratch.  Cost is negligible vs. the per-tile DMA.
    """
    d = 1
    while d < tT:
        rolled = pltpu.roll(v, shift=d, axis=1)            # rolled[i] = v[i - d]
        v = v + jnp.where(lane >= d, rolled, 0.0)          # mask off wrapped lanes
        d *= 2
    return v


def _make_cln_kernel(eps, c_true, tT):
    # Plain Python floats → jaxpr literals, NOT captured jnp constants (previous bug).
    eps_f = float(eps)
    c_f = float(c_true)

    def cln_kernel(x_ref, gain_ref, bias_ref, o_ref, csum_ref, cpow_ref):
        t_idx = pl.program_id(1)

        # Reset the running (sum, sum-of-squares) prefix at the start of every batch row.
        # Correctness relies on the time axis being the innermost, "arbitrary" grid axis.
        @pl.when(t_idx == 0)
        def _():
            csum_ref[...] = jnp.zeros_like(csum_ref)
            cpow_ref[...] = jnp.zeros_like(cpow_ref)

        x = x_ref[...].astype(jnp.float32)                  # (C, tT), f32 accumulation

        # Per-timestep channel reductions (sublane reduce).
        step_sum = jnp.sum(x, axis=0, keepdims=True)        # (1, tT)
        step_pow = jnp.sum(x * x, axis=0, keepdims=True)    # (1, tT)

        lane = lax.broadcasted_iota(jnp.int32, (1, tT), 1)  # lane index within the tile

        # Within-tile cumulative sums + prefix from earlier time tiles.
        cum_sum = _lane_prefix_sum(step_sum, lane, tT) + csum_ref[...]
        cum_pow = _lane_prefix_sum(step_pow, lane, tT) + cpow_ref[...]

        # Carry for the next time tile = last column of the inclusive scan (no extra
        # cross-lane reduction).  For a ragged final tile this column holds garbage, but
        # it is never consumed: the next grid step is t == 0 of the next batch row.
        csum_ref[...] = cum_sum[:, tT - 1:tT]
        cpow_ref[...] = cum_pow[:, tT - 1:tT]

        # entry_cnt = C * (global_t + 1), using the true (unpadded) channel count.
        t0 = (t_idx * tT).astype(jnp.float32)
        cnt = c_f * (t0 + lane.astype(jnp.float32) + 1.0)   # (1, tT)
        inv_cnt = 1.0 / cnt                                 # exact; tiny (1,tT) work
        # (pl.reciprocal(..., approx=True) would push this onto the EUP at ~1e-4 cost.)

        cum_mean = cum_sum * inv_cnt
        cum_var = (cum_pow - 2.0 * cum_mean * cum_sum) * inv_cnt + cum_mean * cum_mean
        # Intentional deviation from the reference: clamp tiny negative values from
        # E[x^2] - mean^2 cancellation so rsqrt never sees a negative argument.
        cum_var = jnp.maximum(cum_var, 0.0)
        inv_std = lax.rsqrt(cum_var + eps_f)                # (1, tT), EUP

        # Fold gain into the inverse std: one fused multiply-add on the (C, tT) tensor.
        gain = gain_ref[...].astype(jnp.float32)            # (C, 1)
        bias = bias_ref[...].astype(jnp.float32)            # (C, 1)
        scale = gain * inv_std                              # (C, tT)
        o_ref[...] = ((x - cum_mean) * scale + bias).astype(o_ref.dtype)

    return cln_kernel


def cln_forward(x, gain, bias, eps=1e-8, time_tile=None):
    """Cumulative LayerNorm.  x: (B, C, T); gain/bias broadcastable to (1, C, 1)."""
    B, C, T = x.shape

    if time_tile is None:
        tT = _pick_time_tile(C, T)
    else:
        tT = min(_round_up(time_tile, 128), _round_up(T, 128))
    n_t = pl.cdiv(T, tT)                   # ragged last tile handled by masked writeback

    g = jnp.reshape(gain, (C, 1)).astype(jnp.float32)
    b = jnp.reshape(bias, (C, 1)).astype(jnp.float32)

    kernel = _make_cln_kernel(eps, C, tT)
    return pl.pallas_call(
        kernel,
        out_shape=jax.ShapeDtypeStruct((B, C, T), x.dtype),
        grid_spec=pltpu.PrefetchScalarGridSpec(
            num_scalar_prefetch=0,
            grid=(B, n_t),
            in_specs=[
                # Full-C blocks (block dim == array dim bypasses the (8,128) rule): no
                # host-side channel padding, no output slice.
                pl.BlockSpec((None, C, tT), lambda bb, tt: (bb, 0, tt)),   # x tile
                pl.BlockSpec((C, 1), lambda bb, tt: (0, 0)),               # gain (grid-invariant)
                pl.BlockSpec((C, 1), lambda bb, tt: (0, 0)),               # bias (grid-invariant)
            ],
            out_specs=pl.BlockSpec((None, C, tT), lambda bb, tt: (bb, 0, tt)),
            scratch_shapes=[
                pltpu.VMEM((1, 1), jnp.float32),   # cross-tile carry: cumulative sum
                pltpu.VMEM((1, 1), jnp.float32),   # cross-tile carry: cumulative sum of squares
            ],
        ),
        compiler_params=pltpu.CompilerParams(
            # Batch shards across TensorCores (megacore); time is the sequential carry
            # axis and must remain innermost + "arbitrary".
            dimension_semantics=("parallel", "arbitrary")),
    )(x, g, b)


def cln_reference(x, gain, bias, eps=1e-8):
    """Pure-JAX reference matching the PyTorch cLN forward exactly."""
    B, C, T = x.shape
    step_sum = x.sum(axis=1)                         # (B, T)
    step_pow_sum = (x ** 2).sum(axis=1)              # (B, T)
    cum_sum = jnp.cumsum(step_sum, axis=1)
    cum_pow_sum = jnp.cumsum(step_pow_sum, axis=1)
    entry_cnt = jnp.arange(C, C * (T + 1), C, dtype=x.dtype)[None, :]   # (1, T)
    cum_mean = cum_sum / entry_cnt
    cum_var = (cum_pow_sum - 2 * cum_mean * cum_sum) / entry_cnt + cum_mean ** 2
    cum_std = jnp.sqrt(cum_var + eps)
    xn = (x - cum_mean[:, None, :]) / cum_std[:, None, :]
    return xn * gain + bias


if __name__ == "__main__":
    # Small shapes; C=6 (not a multiple of 8) and T=300 (not a multiple of 128)
    # deliberately exercise the full-dim channel blocks and the ragged last time tile;
    # time_tile=128 exercises the multi-tile cumulative carry.
    B, C, T = 2, 6, 300
    key = jax.random.PRNGKey(0)
    x = jax.random.normal(key, (B, C, T), dtype=jnp.float32)

    # Deterministic parameter init (matches nn.Parameter(torch.ones/zeros)).
    gain = jnp.ones((1, C, 1), dtype=jnp.float32)
    bias = jnp.zeros((1, C, 1), dtype=jnp.float32)

    ref = cln_reference(x, gain, bias)

    out_multi = jax.block_until_ready(cln_forward(x, gain, bias, time_tile=128))  # 3 time tiles
    out_single = jax.block_until_ready(cln_forward(x, gain, bias))                # 1 ragged tile

    assert out_multi.shape == (B, C, T)
    assert out_single.shape == (B, C, T)
    assert jnp.allclose(out_multi, ref, atol=3e-5, rtol=3e-5), "multi-tile mismatch vs reference"
    assert jnp.allclose(out_single, ref, atol=3e-5, rtol=3e-5), "single-tile mismatch vs reference"

    print("KERNEL_OK")
</pallas_src>

<mosaic_0001>
module attributes {stable_mosaic.version = 11 : i64} {
  func.func @cln_kernel(%arg0: i32, %arg1: i32, %arg2: memref<1x6x128xf32, #tpu.memory_space<vmem>>, %arg3: memref<6x1xf32, #tpu.memory_space<vmem>>, %arg4: memref<6x1xf32, #tpu.memory_space<vmem>>, %arg5: memref<1x6x128xf32, #tpu.memory_space<vmem>>, %arg6: memref<1x1xf32, #tpu.memory_space<vmem>>, %arg7: memref<1x1xf32, #tpu.memory_space<vmem>>) attributes {dimension_semantics = [#tpu.dimension_semantics<parallel>, #tpu.dimension_semantics<arbitrary>], iteration_bounds = array<i64: 2, 3>, scalar_prefetch = 0 : i64, scratch_operands = 2 : i64, tpu.core_type = #tpu.core_type<tc>, window_params = [{transform_indices = @transform_0, window_bounds = array<i64: 1, 6, 128>}, {pipeline_mode = #tpu.pipeline_mode<synchronous>, transform_indices = @transform_1, window_bounds = array<i64: 6, 1>}, {pipeline_mode = #tpu.pipeline_mode<synchronous>, transform_indices = @transform_2, window_bounds = array<i64: 6, 1>}, {transform_indices = @transform_3, window_bounds = array<i64: 1, 6, 128>}]} {
    %c0_i32 = arith.constant 0 : i32
    %0 = arith.cmpi eq, %arg1, %c0_i32 : i32
    %1 = arith.extui %0 : i1 to i32
    %c0_i32_0 = arith.constant 0 : i32
    %2 = arith.cmpi ne, %1, %c0_i32_0 : i32
    scf.if %2 {
      %cst_60 = arith.constant 0.000000e+00 : f32
      %142 = vector.broadcast %cst_60 : f32 to vector<1x1xf32>
      %c0_61 = arith.constant 0 : index
      %c0_62 = arith.constant 0 : index
      %143 = vector.load %arg6[%c0_61, %c0_62] : memref<1x1xf32, #tpu.memory_space<vmem>>, vector<1x1xf32>
      tpu.vector_store %arg6[%c0_61, %c0_62], %142 {strides = array<i32>} : memref<1x1xf32, #tpu.memory_space<vmem>>, vector<1x1xf32>,
      %cst_63 = arith.constant 0.000000e+00 : f32
      %144 = vector.broadcast %cst_63 : f32 to vector<1x1xf32>
      %c0_64 = arith.constant 0 : index
      %c0_65 = arith.constant 0 : index
      %145 = vector.load %arg7[%c0_64, %c0_65] : memref<1x1xf32, #tpu.memory_space<vmem>>, vector<1x1xf32>
      tpu.vector_store %arg7[%c0_64, %c0_65], %144 {strides = array<i32>} : memref<1x1xf32, #tpu.memory_space<vmem>>, vector<1x1xf32>,
    } else {
    }
    %c0 = arith.constant 0 : index
    %c0_1 = arith.constant 0 : index
    %c0_2 = arith.constant 0 : index
    %3 = vector.load %arg2[%c0, %c0_1, %c0_2] : memref<1x6x128xf32, #tpu.memory_space<vmem>>, vector<1x6x128xf32>
    %4 = vector.shape_cast %3 : vector<1x6x128xf32> to vector<6x128xf32>
    %cst = arith.constant dense<0.000000e+00> : vector<128xf32>
    %5 = vector.multi_reduction <add>, %4, %cst [0] : vector<6x128xf32> to vector<128xf32>
    %6 = vector.shape_cast %5 : vector<128xf32> to vector<1x128xf32>
    %7 = arith.mulf %4, %4 : vector<6x128xf32>
    %cst_3 = arith.constant dense<0.000000e+00> : vector<128xf32>
    %8 = vector.multi_reduction <add>, %7, %cst_3 [0] : vector<6x128xf32> to vector<128xf32>
    %9 = vector.shape_cast %8 : vector<128xf32> to vector<1x128xf32>
    %10 = tpu.iota {dimensions = array<i32: 1>} : vector<1x128xi32>
    %c1_i32 = arith.constant 1 : i32
    %11 = tpu.dynamic_rotate %6 by %c1_i32 dim 1 : vector<1x128xf32>, i32 -> vector<1x128xf32>
    %c1_i32_4 = arith.constant 1 : i32
    %12 = vector.broadcast %c1_i32_4 : i32 to vector<1x128xi32>
    %13 = arith.cmpi sge, %10, %12 : vector<1x128xi32>
    %cst_5 = arith.constant 0.000000e+00 : f32
    %14 = vector.broadcast %cst_5 : f32 to vector<1x128xf32>
    %15 = arith.select %13, %11, %14 : vector<1x128xi1>, vector<1x128xf32>
    %16 = arith.addf %6, %15 : vector<1x128xf32>
    %c2_i32 = arith.constant 2 : i32
    %17 = tpu.dynamic_rotate %16 by %c2_i32 dim 1 : vector<1x128xf32>, i32 -> vector<1x128xf32>
    %c2_i32_6 = arith.constant 2 : i32
    %18 = vector.broadcast %c2_i32_6 : i32 to vector<1x128xi32>
    %19 = arith.cmpi sge, %10, %18 : vector<1x128xi32>
    %cst_7 = arith.constant 0.000000e+00 : f32
    %20 = vector.broadcast %cst_7 : f32 to vector<1x128xf32>
    %21 = arith.select %19, %17, %20 : vector<1x128xi1>, vector<1x128xf32>
    %22 = arith.addf %16, %21 : vector<1x128xf32>
    %c4_i32 = arith.constant 4 : i32
    %23 = tpu.dynamic_rotate %22 by %c4_i32 dim 1 : vector<1x128xf32>, i32 -> vector<1x128xf32>
    %c4_i32_8 = arith.constant 4 : i32
    %24 = vector.broadcast %c4_i32_8 : i32 to vector<1x128xi32>
    %25 = arith.cmpi sge, %10, %24 : vector<1x128xi32>
    %cst_9 = arith.constant 0.000000e+00 : f32
    %26 = vector.broadcast %cst_9 : f32 to vector<1x128xf32>
    %27 = arith.select %25, %23, %26 : vector<1x128xi1>, vector<1x128xf32>
    %28 = arith.addf %22, %27 : vector<1x128xf32>
    %c8_i32 = arith.constant 8 : i32
    %29 = tpu.dynamic_rotate %28 by %c8_i32 dim 1 : vector<1x128xf32>, i32 -> vector<1x128xf32>
    %c8_i32_10 = arith.constant 8 : i32
    %30 = vector.broadcast %c8_i32_10 : i32 to vector<1x128xi32>
    %31 = arith.cmpi sge, %10, %30 : vector<1x128xi32>
    %cst_11 = arith.constant 0.000000e+00 : f32
    %32 = vector.broadcast %cst_11 : f32 to vector<1x128xf32>
    %33 = arith.select %31, %29, %32 : vector<1x128xi1>, vector<1x128xf32>
    %34 = arith.addf %28, %33 : vector<1x128xf32>
    %c16_i32 = arith.constant 16 : i32
    %35 = tpu.dynamic_rotate %34 by %c16_i32 dim 1 : vector<1x128xf32>, i32 -> vector<1x128xf32>
    %c16_i32_12 = arith.constant 16 : i32
    %36 = vector.broadcast %c16_i32_12 : i32 to vector<1x128xi32>
    %37 = arith.cmpi sge, %10, %36 : vector<1x128xi32>
    %cst_13 = arith.constant 0.000000e+00 : f32
    %38 = vector.broadcast %cst_13 : f32 to vector<1x128xf32>
    %39 = arith.select %37, %35, %38 : vector<1x128xi1>, vector<1x128xf32>
    %40 = arith.addf %34, %39 : vector<1x128xf32>
    %c32_i32 = arith.constant 32 : i32
    %41 = tpu.dynamic_rotate %40 by %c32_i32 dim 1 : vector<1x128xf32>, i32 -> vector<1x128xf32>
    %c32_i32_14 = arith.constant 32 : i32
    %42 = vector.broadcast %c32_i32_14 : i32 to vector<1x128xi32>
    %43 = arith.cmpi sge, %10, %42 : vector<1x128xi32>
    %cst_15 = arith.constant 0.000000e+00 : f32
    %44 = vector.broadcast %cst_15 : f32 to vector<1x128xf32>
    %45 = arith.select %43, %41, %44 : vector<1x128xi1>, vector<1x128xf32>
    %46 = arith.addf %40, %45 : vector<1x128xf32>
    %c64_i32 = arith.constant 64 : i32
    %47 = tpu.dynamic_rotate %46 by %c64_i32 dim 1 : vector<1x128xf32>, i32 -> vector<1x128xf32>
    %c64_i32_16 = arith.constant 64 : i32
    %48 = vector.broadcast %c64_i32_16 : i32 to vector<1x128xi32>
    %49 = arith.cmpi sge, %10, %48 : vector<1x128xi32>
    %cst_17 = arith.constant 0.000000e+00 : f32
    %50 = vector.broadcast %cst_17 : f32 to vector<1x128xf32>
    %51 = arith.select %49, %47, %50 : vector<1x128xi1>, vector<1x128xf32>
    %52 = arith.addf %46, %51 : vector<1x128xf32>
    %c0_18 = arith.constant 0 : index
    %c0_19 = arith.constant 0 : index
    %53 = vector.load %arg6[%c0_18, %c0_19] : memref<1x1xf32, #tpu.memory_space<vmem>>, vector<1x1xf32>
    %54 = vector.broadcast %53 : vector<1x1xf32> to vector<1x128xf32>
    %55 = arith.addf %52, %54 : vector<1x128xf32>
    %c1_i32_20 = arith.constant 1 : i32
    %56 = tpu.dynamic_rotate %9 by %c1_i32_20 dim 1 : vector<1x128xf32>, i32 -> vector<1x128xf32>
    %c1_i32_21 = arith.constant 1 : i32
    %57 = vector.broadcast %c1_i32_21 : i32 to vector<1x128xi32>
    %58 = arith.cmpi sge, %10, %57 : vector<1x128xi32>
    %cst_22 = arith.constant 0.000000e+00 : f32
    %59 = vector.broadcast %cst_22 : f32 to vector<1x128xf32>
    %60 = arith.select %58, %56, %59 : vector<1x128xi1>, vector<1x128xf32>
    %61 = arith.addf %9, %60 : vector<1x128xf32>
    %c2_i32_23 = arith.constant 2 : i32
    %62 = tpu.dynamic_rotate %61 by %c2_i32_23 dim 1 : vector<1x128xf32>, i32 -> vector<1x128xf32>
    %c2_i32_24 = arith.constant 2 : i32
    %63 = vector.broadcast %c2_i32_24 : i32 to vector<1x128xi32>
    %64 = arith.cmpi sge, %10, %63 : vector<1x128xi32>
    %cst_25 = arith.constant 0.000000e+00 : f32
    %65 = vector.broadcast %cst_25 : f32 to vector<1x128xf32>
    %66 = arith.select %64, %62, %65 : vector<1x128xi1>, vector<1x128xf32>
    %67 = arith.addf %61, %66 : vector<1x128xf32>
    %c4_i32_26 = arith.constant 4 : i32
    %68 = tpu.dynamic_rotate %67 by %c4_i32_26 dim 1 : vector<1x128xf32>, i32 -> vector<1x128xf32>
    %c4_i32_27 = arith.constant 4 : i32
    %69 = vector.broadcast %c4_i32_27 : i32 to vector<1x128xi32>
    %70 = arith.cmpi sge, %10, %69 : vector<1x128xi32>
    %cst_28 = arith.constant 0.000000e+00 : f32
    %71 = vector.broadcast %cst_28 : f32 to vector<1x128xf32>
    %72 = arith.select %70, %68, %71 : vector<1x128xi1>, vector<1x128xf32>
    %73 = arith.addf %67, %72 : vector<1x128xf32>
    %c8_i32_29 = arith.constant 8 : i32
    %74 = tpu.dynamic_rotate %73 by %c8_i32_29 dim 1 : vector<1x128xf32>, i32 -> vector<1x128xf32>
    %c8_i32_30 = arith.constant 8 : i32
    %75 = vector.broadcast %c8_i32_30 : i32 to vector<1x128xi32>
    %76 = arith.cmpi sge, %10, %75 : vector<1x128xi32>
    %cst_31 = arith.constant 0.000000e+00 : f32
    %77 = vector.broadcast %cst_31 : f32 to vector<1x128xf32>
    %78 = arith.select %76, %74, %77 : vector<1x128xi1>, vector<1x128xf32>
    %79 = arith.addf %73, %78 : vector<1x128xf32>
    %c16_i32_32 = arith.constant 16 : i32
    %80 = tpu.dynamic_rotate %79 by %c16_i32_32 dim 1 : vector<1x128xf32>, i32 -> vector<1x128xf32>
    %c16_i32_33 = arith.constant 16 : i32
    %81 = vector.broadcast %c16_i32_33 : i32 to vector<1x128xi32>
    %82 = arith.cmpi sge, %10, %81 : vector<1x128xi32>
    %cst_34 = arith.constant 0.000000e+00 : f32
    %83 = vector.broadcast %cst_34 : f32 to vector<1x128xf32>
    %84 = arith.select %82, %80, %83 : vector<1x128xi1>, vector<1x128xf32>
    %85 = arith.addf %79, %84 : vector<1x128xf32>
    %c32_i32_35 = arith.constant 32 : i32
    %86 = tpu.dynamic_rotate %85 by %c32_i32_35 dim 1 : vector<1x128xf32>, i32 -> vector<1x128xf32>
    %c32_i32_36 = arith.constant 32 : i32
    %87 = vector.broadcast %c32_i32_36 : i32 to vector<1x128xi32>
    %88 = arith.cmpi sge, %10, %87 : vector<1x128xi32>
    %cst_37 = arith.constant 0.000000e+00 : f32
    %89 = vector.broadcast %cst_37 : f32 to vector<1x128xf32>
    %90 = arith.select %88, %86, %89 : vector<1x128xi1>, vector<1x128xf32>
    %91 = arith.addf %85, %90 : vector<1x128xf32>
    %c64_i32_38 = arith.constant 64 : i32
    %92 = tpu.dynamic_rotate %91 by %c64_i32_38 dim 1 : vector<1x128xf32>, i32 -> vector<1x128xf32>
    %c64_i32_39 = arith.constant 64 : i32
    %93 = vector.broadcast %c64_i32_39 : i32 to vector<1x128xi32>
    %94 = arith.cmpi sge, %10, %93 : vector<1x128xi32>
    %cst_40 = arith.constant 0.000000e+00 : f32
    %95 = vector.broadcast %cst_40 : f32 to vector<1x128xf32>
    %96 = arith.select %94, %92, %95 : vector<1x128xi1>, vector<1x128xf32>
    %97 = arith.addf %91, %96 : vector<1x128xf32>
    %c0_41 = arith.constant 0 : index
    %c0_42 = arith.constant 0 : index
    %98 = vector.load %arg7[%c0_41, %c0_42] : memref<1x1xf32, #tpu.memory_space<vmem>>, vector<1x1xf32>
    %99 = vector.broadcast %98 : vector<1x1xf32> to vector<1x128xf32>
    %100 = arith.addf %97, %99 : vector<1x128xf32>
    %101 = vector.extract_strided_slice %55 {offsets = [0, 127], sizes = [1, 1], strides = [1, 1]} : vector<1x128xf32> to vector<1x1xf32>
    %c0_43 = arith.constant 0 : index
    %c0_44 = arith.constant 0 : index
    %102 = vector.load %arg6[%c0_43, %c0_44] : memref<1x1xf32, #tpu.memory_space<vmem>>, vector<1x1xf32>
    tpu.vector_store %arg6[%c0_43, %c0_44], %101 {strides = array<i32>} : memref<1x1xf32, #tpu.memory_space<vmem>>, vector<1x1xf32>,
    %103 = vector.extract_strided_slice %100 {offsets = [0, 127], sizes = [1, 1], strides = [1, 1]} : vector<1x128xf32> to vector<1x1xf32>
    %c0_45 = arith.constant 0 : index
    %c0_46 = arith.constant 0 : index
    %104 = vector.load %arg7[%c0_45, %c0_46] : memref<1x1xf32, #tpu.memory_space<vmem>>, vector<1x1xf32>
    tpu.vector_store %arg7[%c0_45, %c0_46], %103 {strides = array<i32>} : memref<1x1xf32, #tpu.memory_space<vmem>>, vector<1x1xf32>,
    %c128_i32 = arith.constant 128 : i32
    %105 = arith.muli %arg1, %c128_i32 : i32
    %106 = arith.sitofp %105 : i32 to f32
    %107 = arith.sitofp %10 : vector<1x128xi32> to vector<1x128xf32>
    %108 = vector.broadcast %106 : f32 to vector<1x128xf32>
    %109 = arith.addf %108, %107 : vector<1x128xf32>
    %cst_47 = arith.constant 1.000000e+00 : f32
    %110 = vector.broadcast %cst_47 : f32 to vector<1x128xf32>
    %111 = arith.addf %109, %110 : vector<1x128xf32>
    %cst_48 = arith.constant 6.000000e+00 : f32
    %112 = vector.broadcast %cst_48 : f32 to vector<1x128xf32>
    %113 = arith.mulf %112, %111 : vector<1x128xf32>
    %cst_49 = arith.constant 1.000000e+00 : f32
    %114 = vector.broadcast %cst_49 : f32 to vector<1x128xf32>
    %115 = arith.divf %114, %113 : vector<1x128xf32>
    %116 = arith.mulf %55, %115 : vector<1x128xf32>
    %cst_50 = arith.constant 2.000000e+00 : f32
    %117 = vector.broadcast %cst_50 : f32 to vector<1x128xf32>
    %118 = arith.mulf %117, %116 : vector<1x128xf32>
    %119 = arith.mulf %118, %55 : vector<1x128xf32>
    %120 = arith.subf %100, %119 : vector<1x128xf32>
    %121 = arith.mulf %120, %115 : vector<1x128xf32>
    %122 = arith.mulf %116, %116 : vector<1x128xf32>
    %123 = arith.addf %121, %122 : vector<1x128xf32>
    %cst_51 = arith.constant 0.000000e+00 : f32
    %124 = vector.broadcast %cst_51 : f32 to vector<1x128xf32>
    %125 = arith.maximumf %123, %124 : vector<1x128xf32>
    %cst_52 = arith.constant 9.99999993E-9 : f32
    %126 = vector.broadcast %cst_52 : f32 to vector<1x128xf32>
    %127 = arith.addf %125, %126 : vector<1x128xf32>
    %128 = math.rsqrt %127 : vector<1x128xf32>
    %c0_53 = arith.constant 0 : index
    %c0_54 = arith.constant 0 : index
    %129 = vector.load %arg3[%c0_53, %c0_54] : memref<6x1xf32, #tpu.memory_space<vmem>>, vector<6x1xf32>
    %c0_55 = arith.constant 0 : index
    %c0_56 = arith.constant 0 : index
    %130 = vector.load %arg4[%c0_55, %c0_56] : memref<6x1xf32, #tpu.memory_space<vmem>>, vector<6x1xf32>
    %131 = vector.broadcast %129 : vector<6x1xf32> to vector<6x128xf32>
    %132 = vector.broadcast %128 : vector<1x128xf32> to vector<6x128xf32>
    %133 = arith.mulf %131, %132 : vector<6x128xf32>
    %134 = vector.broadcast %116 : vector<1x128xf32> to vector<6x128xf32>
    %135 = arith.subf %4, %134 : vector<6x128xf32>
    %136 = arith.mulf %135, %133 : vector<6x128xf32>
    %137 = vector.broadcast %130 : vector<6x1xf32> to vector<6x128xf32>
    %138 = arith.addf %136, %137 : vector<6x128xf32>
    %c0_57 = arith.constant 0 : index
    %c0_58 = arith.constant 0 : index
    %c0_59 = arith.constant 0 : index
    %139 = vector.load %arg5[%c0_57, %c0_58, %c0_59] : memref<1x6x128xf32, #tpu.memory_space<vmem>>, vector<1x6x128xf32>
    %140 = vector.shape_cast %139 : vector<1x6x128xf32> to vector<6x128xf32>
    %141 = vector.shape_cast %138 : vector<6x128xf32> to vector<1x6x128xf32>
    tpu.vector_store %arg5[%c0_57, %c0_58, %c0_59], %141 {strides = array<i32>} : memref<1x6x128xf32, #tpu.memory_space<vmem>>, vector<1x6x128xf32>,
    return
  }
  func.func @transform_0(%arg0: i32, %arg1: i32) -> (i32, i32, i32) {
    %c0_i32 = arith.constant 0 : i32
    %c0_i32_0 = arith.constant 0 : i32
    return %arg0, %c0_i32, %arg1 : i32, i32, i32
  }
  func.func @transform_1(%arg0: i32, %arg1: i32) -> (i32, i32) {
    %c0_i32 = arith.constant 0 : i32
    %c0_i32_0 = arith.constant 0 : i32
    %c0_i32_1 = arith.constant 0 : i32
    return %c0_i32, %c0_i32_0 : i32, i32
  }
  func.func @transform_2(%arg0: i32, %arg1: i32) -> (i32, i32) {
    %c0_i32 = arith.constant 0 : i32
    %c0_i32_0 = arith.constant 0 : i32
    %c0_i32_1 = arith.constant 0 : i32
    return %c0_i32, %c0_i32_0 : i32, i32
  }
  func.func @transform_3(%arg0: i32, %arg1: i32) -> (i32, i32, i32) {
    %c0_i32 = arith.constant 0 : i32
    %c0_i32_0 = arith.constant 0 : i32
    return %arg0, %c0_i32, %arg1 : i32, i32, i32
  }
}

</mosaic_0001>

<llo_original>
// kernel: tpu_custom_call.1
$region0: #{tpu_custom_call.1}
  #allocation0 [shape = 'u32[]', space=smem, size = 0x4, offset = 0x4, fixed_abs, tag = 'smem constant byte address 0x4 - core index']
  #allocation1 [shape = 'u32[144,128]{1,0:T(1,128)}', space=vmem, size = 0x12000, scoped, tag = 'internal scratch']
  #allocation2 [shape = 'f32[1,1]{1,0:T(1,128)}', space=vmem, size = 0x200, scoped, tag = 'scratch operand']
  #allocation3 [shape = 'f32[1,1]{1,0:T(1,128)}', space=vmem, size = 0x200, scoped, tag = 'scratch operand']
  %s0 = inlined_call_operand.vmem [shape: f32[2,6,300], index: 0, kind: input, shape index: {}]
  %s1 = inlined_call_operand.vmem [shape: f32[6,1], index: 1, kind: input, shape index: {}]
  %s2 = inlined_call_operand.vmem [shape: f32[6,1], index: 2, kind: input, shape index: {}]
  %s3 = inlined_call_operand.vmem [shape: f32[2,6,300], index: 3, kind: output, shape index: {}]
  %s4 = sld [smem:[#allocation0]]
  $region49: #{tpu_custom_call.1} parent=0
    _
  %s6 = ssub.s32 1, %s4
  %s7 = scalar_select 0, %s6, %s4
  loop: start=0, step=1, limit=8
  $region2: #{tpu_custom_call.1} parent=0 // loop_pre_header
    _
  $region3: #{tpu_custom_call.1} parent=0 // loop_header
    %s9 = sphi 0, %s13
    %p10 = scmp.ge.s32.totalorder %s9, 8
    %s16 = sphi 0, %s28
    %s17 = sphi 0, %s24
    %s18 = sphi 0, %s16
    %s19 = sphi 0, %s17
    %s20 = sphi 0, %s18
    %s21 = sphi 0, %s19
    %s33 = sphi 0, %s35
    %s36 = sphi 0, %s33
    %s37 = sphi 0, %s36
    %s53 = sphi 0, %s37
    %s57 = sphi 0, %s57
    %s59 = sphi 0, %s57
    %s60 = sphi 0, %s59
    %s74 = sphi 0, %s60
    %s78 = sphi 0, %s78
    %s80 = sphi 0, %s78
    %s81 = sphi 0, %s80
    %s95 = sphi 0, %s81
    %s103 = sphi 0, %s105
    %s106 = sphi 0, %s103
    %s107 = sphi 0, %s106
    %s123 = sphi 0, %s107
  $region4: #{tpu_custom_call.1} parent=0 // loop_header_branch
    %12 = sbr.rel (%p10) target = $region8
  $region5: #{tpu_custom_call.1} parent=0 // loop_body
    %s14 = ssub.s32 %s9, 1
    %s15 = ssub.s32 %s9, 2
    %s22 = sadd.s32 1, %s17
    %p23 = scmp.ge.s32.totalorder %s22, 3
    %s24 = scalar_select %p23, 0, %s22
    %s25 = sadd.s32 1, %s16
    %s26 = scalar_select %p23, %s25, %s16
    %p27 = scmp.ge.s32.totalorder %s26, 2
    %s28 = scalar_select %p27, 0, %s26
    %s29 = ssub.s32 %s16, %s28
    %s30 = ssub.s32 %s17, %s24
    %s31 = sor.u32 %s29, %s30
    %p32 = scmp.eq.s32.totalorder %s31, 0
    %s34 = sadd.s32 %s33, 1
    %s35 = scalar_select %p32, %s33, %s34
    %p38 = pneg %p32
    %p39 = scmp.eq.s32.totalorder %s9, 5
    %p40 = por %p38, %p39
    %p41 = scmp.ne.s32.totalorder %s33, %s36
    %p42 = scmp.eq.s32.totalorder %s9, 0
    %p43 = por %p41, %p42
    %p44 = scmp.ne.s32.totalorder %s33, %s36
    %p45 = scmp.eq.s32.totalorder %s14, 5
    %p46 = por %p44, %p45
    %p47 = scmp.ne.s32.totalorder %s36, %s37
    %p48 = scmp.eq.s32.totalorder %s14, 0
    %p49 = por %p47, %p48
    %p50 = scmp.ne.s32.totalorder %s36, %s37
    %p51 = scmp.eq.s32.totalorder %s15, 5
    %p52 = por %p50, %p51
    %p54 = scmp.ne.s32.totalorder %s37, %s53
    %p55 = scmp.eq.s32.totalorder %s15, 0
    %p56 = por %p54, %p55
    %s58 = sadd.s32 %s57, 1
    %p61 = scmp.eq.s32.totalorder %s9, 5
    %p62 = scmp.ne.s32.totalorder %s57, %s59
    %p63 = scmp.eq.s32.totalorder %s9, 0
    %p64 = por %p62, %p63
    %p65 = scmp.ne.s32.totalorder %s57, %s59
    %p66 = scmp.eq.s32.totalorder %s14, 5
    %p67 = por %p65, %p66
    %p68 = scmp.ne.s32.totalorder %s59, %s60
    %p69 = scmp.eq.s32.totalorder %s14, 0
    %p70 = por %p68, %p69
    %p71 = scmp.ne.s32.totalorder %s59, %s60
    %p72 = scmp.eq.s32.totalorder %s15, 5
    %p73 = por %p71, %p72
    %p75 = scmp.ne.s32.totalorder %s60, %s74
    %p76 = scmp.eq.s32.totalorder %s15, 0
    %p77 = por %p75, %p76
    %s79 = sadd.s32 %s78, 1
    %p82 = scmp.eq.s32.totalorder %s9, 5
    %p83 = scmp.ne.s32.totalorder %s78, %s80
    %p84 = scmp.eq.s32.totalorder %s9, 0
    %p85 = por %p83, %p84
    %p86 = scmp.ne.s32.totalorder %s78, %s80
    %p87 = scmp.eq.s32.totalorder %s14, 5
    %p88 = por %p86, %p87
    %p89 = scmp.ne.s32.totalorder %s80, %s81
    %p90 = scmp.eq.s32.totalorder %s14, 0
    %p91 = por %p89, %p90
    %p92 = scmp.ne.s32.totalorder %s80, %s81
    %p93 = scmp.eq.s32.totalorder %s15, 5
    %p94 = por %p92, %p93
    %p96 = scmp.ne.s32.totalorder %s81, %s95
    %p97 = scmp.eq.s32.totalorder %s15, 0
    %p98 = por %p96, %p97
    %s99 = ssub.s32 %s16, %s28
    %s100 = ssub.s32 %s17, %s24
    %s101 = sor.u32 %s99, %s100
    %p102 = scmp.eq.s32.totalorder %s101, 0
    %s104 = sadd.s32 %s103, 1
    %s105 = scalar_select %p102, %s103, %s104
    %p108 = pneg %p102
    %p109 = scmp.eq.s32.totalorder %s9, 5
    %p110 = por %p108, %p109
    %p111 = scmp.ne.s32.totalorder %s103, %s106
    %p112 = scmp.eq.s32.totalorder %s9, 0
    %p113 = por %p111, %p112
    %p114 = scmp.ne.s32.totalorder %s103, %s106
    %p115 = scmp.eq.s32.totalorder %s14, 5
    %p116 = por %p114, %p115
    %p117 = scmp.ne.s32.totalorder %s106, %s107
    %p118 = scmp.eq.s32.totalorder %s14, 0
    %p119 = por %p117, %p118
    %p120 = scmp.ne.s32.totalorder %s106, %s107
    %p121 = scmp.eq.s32.totalorder %s15, 5
    %p122 = por %p120, %p121
    %p124 = scmp.ne.s32.totalorder %s107, %s123
    %p125 = scmp.eq.s32.totalorder %s15, 0
    %p126 = por %p124, %p125
    %p127 = scmp.le.s32.totalorder 1, %s9
    %p128 = scmp.lt.s32.totalorder %s9, 7
    %p129 = pnand %p127, %p128
    %p130 = pneg %p129
    // Predicated region
    $region9: #{tpu_custom_call.1} parent=5 // pred_check
      _
    $region10: #{tpu_custom_call.1} parent=5 // pred_check_branch
      %132 = sbr.rel (%p129) target = $region12
    $region11: #{tpu_custom_call.1} parent=5 // pred_region
      %s133 = ssub.s32 %s9, 1
      // Predicated region
      $region13: #{tpu_custom_call.1} parent=11 // pred_check
        %p134 = pneg %p70
      $region14: #{tpu_custom_call.1} parent=11 // pred_check_branch
        %136 = sbr.rel (%p134) target = $region16
      $region15: #{tpu_custom_call.1} parent=11 // pred_region
        _
      $region16: #{tpu_custom_call.1} parent=11 // pred_fallthru
        _
      // Predicated region
      $region17: #{tpu_custom_call.1} parent=11 // pred_check
        %p137 = pneg %p91
      $region18: #{tpu_custom_call.1} parent=11 // pred_check_branch
        %139 = sbr.rel (%p137) target = $region20
      $region19: #{tpu_custom_call.1} parent=11 // pred_region
        _
      $region20: #{tpu_custom_call.1} parent=11 // pred_fallthru
        _
    $region12: #{tpu_custom_call.1} parent=5 // pred_fallthru
      _
    %p140 = scmp.lt.s32.totalorder %s9, 6
    // Predicated region
    $region21: #{tpu_custom_call.1} parent=5 // pred_check
      %p141 = pneg %p140
    $region22: #{tpu_custom_call.1} parent=5 // pred_check_branch
      %143 = sbr.rel (%p141) target = $region24
    $region23: #{tpu_custom_call.1} parent=5 // pred_region
      // Predicated region
      $region25: #{tpu_custom_call.1} parent=23 // pred_check
        %p144 = pneg %p43
      $region26: #{tpu_custom_call.1} parent=23 // pred_check_branch
        %146 = sbr.rel (%p144) target = $region28
      $region27: #{tpu_custom_call.1} parent=23 // pred_region
        %p147 = scmp.lt.s32.totalorder %s16, 1
        %s148 = scalar_select %p147, %s16, 1
        %p149 = scmp.lt.s32.totalorder %s17, 2
        %s150 = scalar_select %p149, %s17, 2
        %s151 = smul.addr %s148, 3
        %s152 = sadd.s32 %s150, %s151
        %s153 = smul.addr %s152, 8
        %s154 = scalar_lea.vmem %s0, %s153
      $region28: #{tpu_custom_call.1} parent=23 // pred_fallthru
        _
    $region24: #{tpu_custom_call.1} parent=5 // pred_fallthru
      _
    %p155 = scmp.le.s32.totalorder 1, %s9
    %p156 = scmp.lt.s32.totalorder %s9, 7
    %p157 = pnand %p155, %p156
    %p158 = pneg %p157
    // Predicated region
    $region29: #{tpu_custom_call.1} parent=5 // pred_check
      _
    $region30: #{tpu_custom_call.1} parent=5 // pred_check_branch
      %160 = sbr.rel (%p157) target = $region32
    $region31: #{tpu_custom_call.1} parent=5 // pred_region
      %s161 = ssub.s32 %s9, 1
      %p162 = scmp.lt.s32.totalorder %s18, 1
      %s163 = scalar_select %p162, %s18, 1
      %p164 = scmp.lt.s32.totalorder %s19, 2
      %s165 = scalar_select %p164, %s19, 2
      %s166 = smul.addr %s163, 3
      %s167 = sadd.s32 %s165, %s166
      %s168 = smul.addr %s167, 8
      %s169 = scalar_lea.vmem %s0, %s168
      %p170 = pneg %p49
      %p171 = pneg %p46
      %p172 = pneg %p70
      %p173 = pneg %p67
      %p174 = pneg %p91
      %p175 = pneg %p88
      %p176 = pneg %p119
      %p177 = pneg %p116
      %p178 = scmp.lt.s32.totalorder %s18, 1
      %s179 = scalar_select %p178, %s18, 1
      %p180 = scmp.lt.s32.totalorder %s19, 2
      %s181 = scalar_select %p180, %s19, 2
      %s182 = smul.addr %s179, 3
      %s183 = sadd.s32 %s181, %s182
      %s184 = smul.addr %s183, 8
      %s185 = scalar_lea.vmem %s3, %s184
      %p186 = scmp.lt.s32.totalorder %s18, 1
      %s187 = scalar_select %p186, %s18, 1
      %p188 = scmp.lt.s32.totalorder %s19, 2
      %s189 = scalar_select %p188, %s19, 2
      %s190 = smul.addr %s187, 3
      %s191 = sadd.s32 %s189, %s190
      %s192 = smul.addr %s191, 8
      %s193 = scalar_lea.vmem %s0, %s192
      %p194 = scmp.lt.s32.totalorder %s18, 1
      %s195 = scalar_select %p194, %s18, 1
      %p196 = scmp.lt.s32.totalorder %s19, 2
      %s197 = scalar_select %p196, %s19, 2
      %s198 = smul.addr %s195, 3
      %s199 = sadd.s32 %s197, %s198
      %s200 = smul.addr %s199, 8
      %s201 = scalar_lea.vmem %s3, %s200
      %p202 = scmp.eq.s32.totalorder %s19, 0
      // Predicated region
      $region33: #{tpu_custom_call.1} parent=31 // pred_check
        %p203 = pneg %p202
      $region34: #{tpu_custom_call.1} parent=31 // pred_check_branch
        %205 = sbr.rel (%p203) target = $region36
      $region35: #{tpu_custom_call.1} parent=31 // pred_region
        %vm206 = vcmask 0
        %207 = vst.msk [vmem:[#allocation2] sm:$0x1] %vm206, 0.0
        %208 = vst.msk [vmem:[#allocation3] sm:$0x1] %vm206, 0.0
      $region36: #{tpu_custom_call.1} parent=31 // pred_fallthru
        _
      %v209 = vld [vmem:[%s193] sm:$0x3f]
      %vm210 = vcmask 1045504
      %v211 = vsel %vm210, %v209, 0.0
      %v212 = vrot.slane %v211, 4
      %v213 = vadd.f32 %v211, %v212
      %v214 = vrot.slane %v213, 2
      %v215 = vadd.f32 %v213, %v214
      %v216 = vrot.slane %v215, 1
      %v217 = vadd.f32 %v215, %v216
      %v218 = vmul.f32 %v209, %v209
      %v219 = vsel %vm210, %v218, 0.0
      %v220 = vrot.slane %v219, 4
      %v221 = vadd.f32 %v219, %v220
      %v222 = vrot.slane %v221, 2
      %v223 = vadd.f32 %v221, %v222
      %v224 = vrot.slane %v223, 1
      %v225 = vadd.f32 %v223, %v224
      %v226 = vlaneseq
      %v227 = vand.u32 %v226, 127
      %228 = vrot.lane.b32.xlu0 %v217, 1
      %v229 = vpop.permute.xlu0 %228
      %vm230 = vcmp.ge.s32.totalorder %v227, 1
      %v231 = vsel %vm230, %v229, 0.0
      %v232 = vadd.f32 %v217, %v231
      %233 = vrot.lane.b32.xlu0 %v232, 2
      %v234 = vpop.permute.xlu0 %233
      %vm235 = vcmp.ge.s32.totalorder %v227, 2
      %v236 = vsel %vm235, %v234, 0.0
      %v237 = vadd.f32 %v232, %v236
      %238 = vrot.lane.b32.xlu0 %v237, 4
      %v239 = vpop.permute.xlu0 %238
      %vm240 = vcmp.ge.s32.totalorder %v227, 4
      %v241 = vsel %vm240, %v239, 0.0
      %v242 = vadd.f32 %v237, %v241
      %243 = vrot.lane.b32.xlu0 %v242, 8
      %v244 = vpop.permute.xlu0 %243
      %vm245 = vcmp.ge.s32.totalorder %v227, 8
      %v246 = vsel %vm245, %v244, 0.0
      %v247 = vadd.f32 %v242, %v246
      %248 = vrot.lane.b32.xlu0 %v247, 16
      %v249 = vpop.permute.xlu0 %248
      %vm250 = vcmp.ge.s32.totalorder %v227, 16
      %v251 = vsel %vm250, %v249, 0.0
      %v252 = vadd.f32 %v247, %v251
      %253 = vrot.lane.b32.xlu0 %v252, 32
      %v254 = vpop.permute.xlu0 %253
      %vm255 = vcmp.ge.s32.totalorder %v227, 32
      %v256 = vsel %vm255, %v254, 0.0
      %v257 = vadd.f32 %v252, %v256
      %258 = vrot.lane.b32.xlu0 %v257, 64
      %v259 = vpop.permute.xlu0 %258
      %vm260 = vcmp.ge.s32.totalorder %v227, 64
      %v261 = vsel %vm260, %v259, 0.0
      %v262 = vadd.f32 %v257, %v261
      %v263 = vld [vmem:[#allocation2] sm:$0x1]
      %265 = vset.pattern.permute.xlu0 0
      %266 = vperm.xlu0 %265, %v263
      %v267 = vpop.permute.xlu0 %266
      %v269 = vlaneseq
      %v270 = vshrl.u32 %v269, 7
      %v271 = vsub.s32 0, %v270
      %v272 = vrot.slane %v267, %v271
      %v273 = vadd.f32 %v262, %v272
      %274 = vrot.lane.b32.xlu0 %v225, 1
      %v275 = vpop.permute.xlu0 %274
      %v276 = vsel %vm230, %v275, 0.0
      %v277 = vadd.f32 %v225, %v276
      %278 = vrot.lane.b32.xlu0 %v277, 2
      %v279 = vpop.permute.xlu0 %278
      %v280 = vsel %vm235, %v279, 0.0
      %v281 = vadd.f32 %v277, %v280
      %282 = vrot.lane.b32.xlu0 %v281, 4
      %v283 = vpop.permute.xlu0 %282
      %v284 = vsel %vm240, %v283, 0.0
      %v285 = vadd.f32 %v281, %v284
      %286 = vrot.lane.b32.xlu0 %v285, 8
      %v287 = vpop.permute.xlu0 %286
      %v288 = vsel %vm245, %v287, 0.0
      %v289 = vadd.f32 %v285, %v288
      %290 = vrot.lane.b32.xlu0 %v289, 16
      %v291 = vpop.permute.xlu0 %290
      %v292 = vsel %vm250, %v291, 0.0
      %v293 = vadd.f32 %v289, %v292
      %294 = vrot.lane.b32.xlu0 %v293, 32
      %v295 = vpop.permute.xlu0 %294
      %v296 = vsel %vm255, %v295, 0.0
      %v297 = vadd.f32 %v293, %v296
      %298 = vrot.lane.b32.xlu0 %v297, 64
      %v299 = vpop.permute.xlu0 %298
      %v300 = vsel %vm260, %v299, 0.0
      %v301 = vadd.f32 %v297, %v300
      %v302 = vld [vmem:[#allocation3] sm:$0x1]
      %304 = vset.pattern.permute.xlu0 0
      %305 = vperm.xlu0 %304, %v302
      %v306 = vpop.permute.xlu0 %305
      %v308 = vlaneseq
      %v309 = vshrl.u32 %v308, 7
      %v310 = vsub.s32 0, %v309
      %v311 = vrot.slane %v306, %v310
      %v312 = vadd.f32 %v301, %v311
      %314 = vrot.lane.b32.xlu0 %v273, 1
      %v315 = vpop.permute.xlu0 %314
      %vm317 = vcmask 0
      %318 = vst.msk [vmem:[#allocation2] sm:$0x1] %vm317, %v315
      %320 = vrot.lane.b32.xlu0 %v312, 1
      %v321 = vpop.permute.xlu0 %320
      %323 = vst.msk [vmem:[#allocation3] sm:$0x1] %vm317, %v321
      %s324 = smul.u32 %s19, 128
      %s325 = scvt.s32.f32 %s324
      %v326 = vcvt.s32.f32 %v227
      %v327 = vstv %s325
      %v328 = vadd.f32 %v327, %v326
      %v329 = vadd.f32 %v328, 1.0
      %v330 = vmul.f32 %v329, 6.0
      %v331 = vrcp.pop %v330
      %v332 = vmul.f32 1.0, %v331
      %v333 = vmul.f32 %v273, %v332
      %v334 = vmul.f32 %v333, 2.0
      %v335 = vmul.f32 %v334, %v273
      %v336 = vsub.f32 %v312, %v335
      %v337 = vmul.f32 %v336, %v332
      %v338 = vmul.f32 %v333, %v333
      %v339 = vadd.f32 %v337, %v338
      %v340 = vmax.f32 %v339, 0.0
      %v341 = vadd.f32 %v340, 1e-08
      %v342 = vrsqrt.pop %v341
      %v343 = vld [vmem:[%s1] sm:$0x3f]
      %v344 = vld [vmem:[%s2] sm:$0x3f]
      %346 = vset.pattern.permute.xlu0 0
      %347 = vperm.xlu0 %346, %v343
      %v348 = vpop.permute.xlu0 %347
      %v350 = vlaneseq
      %v351 = vshrl.u32 %v350, 7
      %v352 = vsub.s32 0, %v351
      %v353 = vrot.slane %v342, %v352
      %v354 = vmul.f32 %v348, %v353
      %v355 = vlaneseq
      %v356 = vshrl.u32 %v355, 7
      %v357 = vsub.s32 0, %v356
      %v358 = vrot.slane %v333, %v357
      %v359 = vsub.f32 %v209, %v358
      %v360 = vmul.f32 %v359, %v354
      %362 = vset.pattern.permute.xlu0 0
      %363 = vperm.xlu0 %362, %v344
      %v364 = vpop.permute.xlu0 %363
      %v366 = vadd.f32 %v360, %v364
      %367 = vst [vmem:[%s201] sm:$0x3f] %v366
      %p368 = scmp.lt.s32.totalorder %s18, 1
      %s369 = scalar_select %p368, %s18, 1
      %p370 = scmp.lt.s32.totalorder %s19, 2
      %s371 = scalar_select %p370, %s19, 2
      %s372 = smul.addr %s369, 3
      %s373 = sadd.s32 %s371, %s372
      %s374 = smul.addr %s373, 8
      %s375 = scalar_lea.vmem %s3, %s374
      // Predicated region
      $region37: #{tpu_custom_call.1} parent=31 // pred_check
        %p376 = pneg %p116
      $region38: #{tpu_custom_call.1} parent=31 // pred_check_branch
        %378 = sbr.rel (%p376) target = $region40
      $region39: #{tpu_custom_call.1} parent=31 // pred_region
        _
      $region40: #{tpu_custom_call.1} parent=31 // pred_fallthru
        _
    $region32: #{tpu_custom_call.1} parent=5 // pred_fallthru
      _
    %p379 = scmp.le.s32.totalorder 2, %s9
    // Predicated region
    $region41: #{tpu_custom_call.1} parent=5 // pred_check
      %p380 = pneg %p379
    $region42: #{tpu_custom_call.1} parent=5 // pred_check_branch
      %382 = sbr.rel (%p380) target = $region44
    $region43: #{tpu_custom_call.1} parent=5 // pred_region
      %s383 = ssub.s32 %s9, 2
      // Predicated region
      $region45: #{tpu_custom_call.1} parent=43 // pred_check
        %p384 = pneg %p122
      $region46: #{tpu_custom_call.1} parent=43 // pred_check_branch
        %386 = sbr.rel (%p384) target = $region48
      $region47: #{tpu_custom_call.1} parent=43 // pred_region
        %p387 = scmp.lt.s32.totalorder %s20, 1
        %s388 = scalar_select %p387, %s20, 1
        %p389 = scmp.lt.s32.totalorder %s21, 2
        %s390 = scalar_select %p389, %s21, 2
        %s391 = smul.addr %s388, 3
        %s392 = sadd.s32 %s390, %s391
        %s393 = smul.addr %s392, 8
        %s394 = scalar_lea.vmem %s3, %s393
      $region48: #{tpu_custom_call.1} parent=43 // pred_fallthru
        _
    $region44: #{tpu_custom_call.1} parent=5 // pred_fallthru
      _
  $region6: #{tpu_custom_call.1} parent=0 // loop_footer
    %s13 = sadd.s32 1, %s9
  $region7: #{tpu_custom_call.1} parent=0 // loop_footer_branch
    %8 = sbr.rel target = $region3
  $region8: #{tpu_custom_call.1} parent=0 // loop_exit
    _

</llo_original>
